<compile_context>
chip_gen: v7x
topology: tpu7x:2x2x1
jax: 0.10.0
libtpu: 0.0.40
codegen_flags: <defaults>
</compile_context>

<pallas_src>
import math
import jax
import jax.numpy as jnp
from jax.experimental import pallas as pl
from jax.experimental.pallas import tpu as pltpu

LANE = 128      # padded width (lane axis) for the input/hidden contraction dims
OUT_PAD = 8     # padded output width (n_out = 3 real lanes)
BIAS_ROWS = 8   # extra rows at the bottom of the packed weight buffer for b1,b2,b3


def mlp_kernel(x_ref, w_ref, o_ref, xp_ref):
    """x_ref: (Bt, n_in) f32; w_ref: (3*128+8, 128) compute-dtype;
    o_ref: (Bt, OUT_PAD) f32; xp_ref: (Bt, 128) VMEM scratch in compute dtype."""
    n_in = x_ref.shape[1]
    cdt = xp_ref.dtype

    # Build the zero-padded 128-lane input tile in VMEM (no HBM padding traffic).
    xp_ref[...] = jnp.zeros_like(xp_ref)
    xp_ref[:, :n_in] = x_ref[...].astype(cdt)
    x = xp_ref[...]

    w1 = w_ref[0 * LANE:1 * LANE, :]                                 # static slices:
    w2 = w_ref[1 * LANE:2 * LANE, :]                                 # zero-cost views
    w3 = w_ref[2 * LANE:3 * LANE, :]
    b1 = w_ref[3 * LANE + 0:3 * LANE + 1, :].astype(jnp.float32)     # (1, 128)
    b2 = w_ref[3 * LANE + 1:3 * LANE + 2, :].astype(jnp.float32)
    b3 = w_ref[3 * LANE + 2:3 * LANE + 3, :].astype(jnp.float32)

    # Layer 1: Linear + ReLU (bf16 MXU, f32 accumulation).
    h = jnp.maximum(jnp.dot(x, w1, preferred_element_type=jnp.float32) + b1, 0.0)
    # TODO(synk): nn.Dropout(0.25) is identity here (eval mode); training parity would
    # need a stochastic mask via pltpu.prng_seed / pltpu.prng_random_bits plus 1/(1-p).

    # Layer 2: Linear + ReLU.
    h = jnp.maximum(jnp.dot(h.astype(cdt), w2, preferred_element_type=jnp.float32) + b2, 0.0)

    # Output layer: Linear; only the first OUT_PAD lanes are written back (n_out=3 real).
    y = jnp.dot(h.astype(cdt), w3, preferred_element_type=jnp.float32) + b3
    o_ref[...] = y[:, :o_ref.shape[1]].astype(o_ref.dtype)


def init_params(key, n_in=15, n_hidden=100, n_out=3):
    """nn.Linear-style init: U(-1/sqrt(fan_in), 1/sqrt(fan_in)); weights stored (in, out)."""
    dims = [(n_in, n_hidden), (n_hidden, n_hidden), (n_hidden, n_out)]
    params = {}
    keys = jax.random.split(key, 2 * len(dims))
    for li, (fan_in, fan_out) in enumerate(dims, start=1):
        bound = 1.0 / math.sqrt(fan_in)
        params[f"w{li}"] = jax.random.uniform(keys[2 * li - 2], (fan_in, fan_out),
                                              jnp.float32, minval=-bound, maxval=bound)
        params[f"b{li}"] = jax.random.uniform(keys[2 * li - 1], (fan_out,),
                                              jnp.float32, minval=-bound, maxval=bound)
    return params


def pack_params(params, n_in=15, n_hidden=100, n_out=3, dtype=jnp.bfloat16):
    """Pack W1,W2,W3 (zero-padded to 128x128 blocks) plus three bias rows into ONE
    (3*128 + 8, 128) buffer in the compute dtype (bf16 by default, f32 accumulation)."""
    assert n_in <= LANE and n_hidden <= LANE and n_out <= OUT_PAD
    w = jnp.zeros((3 * LANE + BIAS_ROWS, LANE), jnp.float32)
    w = w.at[:n_in, :n_hidden].set(params["w1"])
    w = w.at[LANE:LANE + n_hidden, :n_hidden].set(params["w2"])
    w = w.at[2 * LANE:2 * LANE + n_hidden, :n_out].set(params["w3"])
    w = w.at[3 * LANE + 0, :n_hidden].set(params["b1"])
    w = w.at[3 * LANE + 1, :n_hidden].set(params["b2"])
    w = w.at[3 * LANE + 2, :n_out].set(params["b3"])
    return {"w_all": w.astype(dtype), "n_in": n_in, "n_hidden": n_hidden, "n_out": n_out}


def _round_up(n, m):
    return ((n + m - 1) // m) * m


def mlp_forward(x, packed, *, tile_b=2048, gridless_max=1024):
    """x: (B, n_in) float32. Returns (B, n_out) float32."""
    w_all = packed["w_all"]
    n_in, n_out = packed["n_in"], packed["n_out"]
    cdt = w_all.dtype
    B = x.shape[0]
    assert x.shape[1] == n_in
    x = x.astype(jnp.float32)

    use_grid = B > gridless_max
    if use_grid:
        # Large tile amortizes the per-step pipeline overhead; cap so there are always
        # >= 2 grid steps (keeps both v7x TensorCores fed via the "parallel" axis).
        tb = max(256, min(_round_up(tile_b, 256), _round_up(pl.cdiv(B, 2), 256)))
        b_pad = _round_up(B, tb)
    else:
        tb = None
        b_pad = max(16, _round_up(B, 16))   # 16: bf16 sublane packing of the VMEM scratch

    # Only pad the (narrow, natural-width) batch dim, and only when needed.
    x_in = x if b_pad == B else jnp.zeros((b_pad, n_in), jnp.float32).at[:B].set(x)

    out_shape = jax.ShapeDtypeStruct((b_pad, OUT_PAD), jnp.float32)
    cost = pl.CostEstimate(
        flops=2 * b_pad * LANE * LANE * 3,
        transcendentals=0,
        bytes_accessed=(x_in.size * x_in.dtype.itemsize
                        + w_all.size * w_all.dtype.itemsize
                        + b_pad * OUT_PAD * 4),
    )

    if use_grid:
        # Batch-tiled path: weights stay VMEM-resident (constant block index); batch axis
        # is "parallel" so megacore/dual-TC parts shard it.
        out = pl.pallas_call(
            mlp_kernel,
            out_shape=out_shape,
            grid=(b_pad // tb,),
            in_specs=[
                pl.BlockSpec((tb, n_in), lambda i: (i, 0)),           # natural-width x
                pl.BlockSpec(w_all.shape, lambda i: (0, 0)),          # resident weights
            ],
            out_specs=pl.BlockSpec((tb, OUT_PAD), lambda i: (i, 0)),  # narrow writeback
            scratch_shapes=[pltpu.VMEM((tb, LANE), cdt)],
            compiler_params=pltpu.CompilerParams(
                dimension_semantics=("parallel",),
            ),
            cost_estimate=cost,
        )(x_in, w_all)
    else:
        # Gridless path: no pipeline prologue/epilogue, whole arrays as single VMEM blocks.
        out = pl.pallas_call(
            mlp_kernel,
            out_shape=out_shape,
            in_specs=[
                pl.BlockSpec(memory_space=pltpu.MemorySpace.VMEM),
                pl.BlockSpec(memory_space=pltpu.MemorySpace.VMEM),
            ],
            out_specs=pl.BlockSpec(memory_space=pltpu.MemorySpace.VMEM),
            scratch_shapes=[pltpu.VMEM((b_pad, LANE), cdt)],
            cost_estimate=cost,
        )(x_in, w_all)

    return out[:B, :n_out]


def reference_forward(x, params):
    h = jnp.maximum(x @ params["w1"] + params["b1"], 0.0)
    h = jnp.maximum(h @ params["w2"] + params["b2"], 0.0)
    return h @ params["w3"] + params["b3"]


if __name__ == "__main__":
    key = jax.random.PRNGKey(0)
    pkey, xkey, xkey2 = jax.random.split(key, 3)

    n_in, n_hidden, n_out = 15, 100, 3
    params = init_params(pkey, n_in, n_hidden, n_out)
    packed = pack_params(params, n_in, n_hidden, n_out, dtype=jnp.bfloat16)

    # Small batch: gridless single-block path.
    batch = 8
    x = jax.random.normal(xkey, (batch, n_in), dtype=jnp.float32)
    out = jax.block_until_ready(mlp_forward(x, packed))
    ref = reference_forward(x, params)
    assert out.shape == (batch, n_out)
    # bf16 weights/activations (f32 accumulation) -> loose tolerance vs. f32 reference.
    assert jnp.allclose(out, ref, atol=5e-2, rtol=5e-2), float(jnp.max(jnp.abs(out - ref)))

    # Larger ragged batch: batch-tiled "parallel" grid path (small tiles for the test).
    batch2 = 600
    x2 = jax.random.normal(xkey2, (batch2, n_in), dtype=jnp.float32)
    out2 = jax.block_until_ready(mlp_forward(x2, packed, tile_b=256, gridless_max=128))
    ref2 = reference_forward(x2, params)
    assert out2.shape == (batch2, n_out)
    assert jnp.allclose(out2, ref2, atol=5e-2, rtol=5e-2), float(jnp.max(jnp.abs(out2 - ref2)))

    print("KERNEL_OK")
</pallas_src>

<mosaic_0001>
module attributes {stable_mosaic.version = 11 : i64} {
  func.func @mlp_kernel(%arg0: memref<16x15xf32, #tpu.memory_space<vmem>>, %arg1: memref<392x128xbf16, #tpu.memory_space<vmem>>, %arg2: memref<16x8xf32, #tpu.memory_space<vmem>>, %arg3: memref<16x128xbf16, #tpu.memory_space<vmem>>) attributes {dimension_semantics = [], scalar_prefetch = 0 : i64, scratch_operands = 1 : i64, tpu.core_type = #tpu.core_type<tc>} {
    %cst = arith.constant 0.000000e+00 : bf16
    %0 = vector.broadcast %cst : bf16 to vector<16x128xbf16>
    %c0 = arith.constant 0 : index
    %c0_0 = arith.constant 0 : index
    %1 = vector.load %arg3[%c0, %c0_0] : memref<16x128xbf16, #tpu.memory_space<vmem>>, vector<16x128xbf16>
    tpu.vector_store %arg3[%c0, %c0_0], %0 {strides = array<i32>} : memref<16x128xbf16, #tpu.memory_space<vmem>>, vector<16x128xbf16>,
    %c0_1 = arith.constant 0 : index
    %c0_2 = arith.constant 0 : index
    %2 = vector.load %arg0[%c0_1, %c0_2] : memref<16x15xf32, #tpu.memory_space<vmem>>, vector<16x15xf32>
    %3 = arith.truncf %2 : vector<16x15xf32> to vector<16x15xbf16>
    %c0_3 = arith.constant 0 : index
    %c0_4 = arith.constant 0 : index
    %4 = vector.load %arg3[%c0_3, %c0_4] : memref<16x128xbf16, #tpu.memory_space<vmem>>, vector<16x15xbf16>
    tpu.vector_store %arg3[%c0_3, %c0_4], %3 {strides = array<i32>} : memref<16x128xbf16, #tpu.memory_space<vmem>>, vector<16x15xbf16>,
    %c0_5 = arith.constant 0 : index
    %c0_6 = arith.constant 0 : index
    %5 = vector.load %arg3[%c0_5, %c0_6] : memref<16x128xbf16, #tpu.memory_space<vmem>>, vector<16x128xbf16>
    %c0_7 = arith.constant 0 : index
    %c0_8 = arith.constant 0 : index
    %6 = vector.load %arg1[%c0_7, %c0_8] : memref<392x128xbf16, #tpu.memory_space<vmem>>, vector<128x128xbf16>
    %c128 = arith.constant 128 : index
    %c0_9 = arith.constant 0 : index
    %7 = vector.load %arg1[%c128, %c0_9] : memref<392x128xbf16, #tpu.memory_space<vmem>>, vector<128x128xbf16>
    %c256 = arith.constant 256 : index
    %c0_10 = arith.constant 0 : index
    %8 = vector.load %arg1[%c256, %c0_10] : memref<392x128xbf16, #tpu.memory_space<vmem>>, vector<128x128xbf16>
    %c384 = arith.constant 384 : index
    %c0_11 = arith.constant 0 : index
    %9 = vector.load %arg1[%c384, %c0_11] : memref<392x128xbf16, #tpu.memory_space<vmem>>, vector<1x128xbf16>
    %10 = arith.extf %9 : vector<1x128xbf16> to vector<1x128xf32>
    %c385 = arith.constant 385 : index
    %c0_12 = arith.constant 0 : index
    %11 = vector.load %arg1[%c385, %c0_12] : memref<392x128xbf16, #tpu.memory_space<vmem>>, vector<1x128xbf16>
    %12 = arith.extf %11 : vector<1x128xbf16> to vector<1x128xf32>
    %c386 = arith.constant 386 : index
    %c0_13 = arith.constant 0 : index
    %13 = vector.load %arg1[%c386, %c0_13] : memref<392x128xbf16, #tpu.memory_space<vmem>>, vector<1x128xbf16>
    %14 = arith.extf %13 : vector<1x128xbf16> to vector<1x128xf32>
    %cst_14 = arith.constant dense<0.000000e+00> : vector<16x128xf32>
    %15 = tpu.matmul %5, %6, %cst_14 {dimension_numbers = #tpu.dot_dimension_numbers<[1], [0], [0], [1], [0, 0, 1, 1], [], []>} : vector<16x128xbf16>, vector<128x128xbf16>, vector<16x128xf32> -> vector<16x128xf32>
    %16 = vector.broadcast %10 : vector<1x128xf32> to vector<16x128xf32>
    %17 = arith.addf %15, %16 : vector<16x128xf32>
    %cst_15 = arith.constant 0.000000e+00 : f32
    %18 = vector.broadcast %cst_15 : f32 to vector<16x128xf32>
    %19 = arith.maximumf %17, %18 : vector<16x128xf32>
    %20 = arith.truncf %19 : vector<16x128xf32> to vector<16x128xbf16>
    %cst_16 = arith.constant dense<0.000000e+00> : vector<16x128xf32>
    %21 = tpu.matmul %20, %7, %cst_16 {dimension_numbers = #tpu.dot_dimension_numbers<[1], [0], [0], [1], [0, 0, 1, 1], [], []>} : vector<16x128xbf16>, vector<128x128xbf16>, vector<16x128xf32> -> vector<16x128xf32>
    %22 = vector.broadcast %12 : vector<1x128xf32> to vector<16x128xf32>
    %23 = arith.addf %21, %22 : vector<16x128xf32>
    %cst_17 = arith.constant 0.000000e+00 : f32
    %24 = vector.broadcast %cst_17 : f32 to vector<16x128xf32>
    %25 = arith.maximumf %23, %24 : vector<16x128xf32>
    %26 = arith.truncf %25 : vector<16x128xf32> to vector<16x128xbf16>
    %cst_18 = arith.constant dense<0.000000e+00> : vector<16x128xf32>
    %27 = tpu.matmul %26, %8, %cst_18 {dimension_numbers = #tpu.dot_dimension_numbers<[1], [0], [0], [1], [0, 0, 1, 1], [], []>} : vector<16x128xbf16>, vector<128x128xbf16>, vector<16x128xf32> -> vector<16x128xf32>
    %28 = vector.broadcast %14 : vector<1x128xf32> to vector<16x128xf32>
    %29 = arith.addf %27, %28 : vector<16x128xf32>
    %30 = vector.extract_strided_slice %29 {offsets = [0, 0], sizes = [16, 8], strides = [1, 1]} : vector<16x128xf32> to vector<16x8xf32>
    %c0_19 = arith.constant 0 : index
    %c0_20 = arith.constant 0 : index
    %31 = vector.load %arg2[%c0_19, %c0_20] : memref<16x8xf32, #tpu.memory_space<vmem>>, vector<16x8xf32>
    tpu.vector_store %arg2[%c0_19, %c0_20], %30 {strides = array<i32>} : memref<16x8xf32, #tpu.memory_space<vmem>>, vector<16x8xf32>,
    return
  }
}

</mosaic_0001>

<llo_original>
// kernel: tpu_custom_call.1
$region0: #{tpu_custom_call.1}
  #allocation0 [shape = 'u32[]', space=smem, size = 0x4, offset = 0x4, fixed_abs, tag = 'smem constant byte address 0x4 - core index']
  #allocation1 [shape = 'u32[144,128]{1,0:T(1,128)}', space=vmem, size = 0x12000, scoped, tag = 'internal scratch']
  #allocation2 [shape = 'bf16[16,128]{1,0:T(16,128)(2,1)}', space=vmem, size = 0x1000, scoped, tag = 'scratch operand']
  %s0 = inlined_call_operand.hbm [shape: f32[16,15], index: 0, kind: input, shape index: {}]
  %s1 = inlined_call_operand.hbm [shape: bf16[392,128], index: 1, kind: input, shape index: {}]
  %s2 = inlined_call_operand.vmem [shape: f32[16,8], index: 2, kind: output, shape index: {}]
  %s3 = sld [smem:[#allocation0]]
  $region26: #{tpu_custom_call.1} parent=0
    _
  %s5 = ssub.s32 1, %s3
  %s6 = scalar_select 0, %s5, %s3
  $region1: #{tpu_custom_call.1} parent=0
    #allocation3 [shape = 'u8[8192]{0}', space=vmem, size = 0x2000, scoped, tag = 'input window, operand 0, single buffered']
    #allocation4 [shape = 's32[1]{0}', space=sflag, size = 0x4, scoped, tag = 'scoped memory for tpu_custom_call.1']
    #allocation5 [shape = 'u8[100352]{0}', space=vmem, size = 0x18800, scoped, tag = 'input window, operand 1, single buffered']
    #allocation6 [shape = 's32[1]{0}', space=sflag, size = 0x4, scoped, tag = 'scoped memory for tpu_custom_call.1']
    %7 = vsyncpa [#allocation4], 0
    %8 = vsyncpa [#allocation6], 0
    // Predicated region
    $region2: #{tpu_custom_call.1} parent=1 // pred_check
      _
    $region3: #{tpu_custom_call.1} parent=1 // pred_check_branch
      %10 = sbr.rel (0) target = $region5
    $region4: #{tpu_custom_call.1} parent=1 // pred_region
      %s12 = ssub.s32 256, 256
      %13 = vsyncadd [#allocation4], %s12
      %s14 = sshll.u32 [#allocation3], 4
      %s15 = int_to_ptr.vmem [resolvable:$true] %s14
      %20 = dma.hbm_to_vmem [thread:$0]  %s0, 256, %s15, [#allocation4], 128, 128, 8
    $region5: #{tpu_custom_call.1} parent=1 // pred_fallthru
      _
    // Predicated region
    $region6: #{tpu_custom_call.1} parent=1 // pred_check
      _
    $region7: #{tpu_custom_call.1} parent=1 // pred_check_branch
      %22 = sbr.rel (0) target = $region9
    $region8: #{tpu_custom_call.1} parent=1 // pred_region
      %s24 = ssub.s32 3136, 3136
      %25 = vsyncadd [#allocation6], %s24
      %s26 = sshll.u32 [#allocation5], 4
      %s27 = int_to_ptr.vmem [resolvable:$true] %s26
      %32 = dma.hbm_to_vmem [thread:$0]  %s1, 3136, %s27, [#allocation6], 64, 64, 4
    $region9: #{tpu_custom_call.1} parent=1 // pred_fallthru
      _
    // Predicated region
    $region10: #{tpu_custom_call.1} parent=1 // pred_check
      _
    $region11: #{tpu_custom_call.1} parent=1 // pred_check_branch
      %34 = sbr.rel (0) target = $region13
    $region12: #{tpu_custom_call.1} parent=1 // pred_region
      %35 = dma.done [#allocation4], 256
    $region13: #{tpu_custom_call.1} parent=1 // pred_fallthru
      _
    // Predicated region
    $region14: #{tpu_custom_call.1} parent=1 // pred_check
      _
    $region15: #{tpu_custom_call.1} parent=1 // pred_check_branch
      %37 = sbr.rel (0) target = $region17
    $region16: #{tpu_custom_call.1} parent=1 // pred_region
      %38 = dma.done [#allocation6], 3136
    $region17: #{tpu_custom_call.1} parent=1 // pred_fallthru
      _
    %40 = vst [vmem:[#allocation2] sm:$0xff] 0
    %v41 = vld [vmem:[#allocation3] sm:$0xff]
    %v42 = vld [vmem:[#allocation3 + $0x8] sm:$0xff]
    %v43 = vpack.c.bf16 %v42, %v41
    %vm44 = vcmask 121856
    %45 = vst.msk [vmem:[#allocation2] sm:$0xff] %vm44, %v43
    %v46 = vld [vmem:[#allocation2] sm:$0xff]
    %v47 = vld [vmem:[#allocation5] sm:$0xf]
    %v48 = vld [vmem:[#allocation5 + $0x4] sm:$0xf]
    %v49 = vld [vmem:[#allocation5 + $0x8] sm:$0xf]
    %v50 = vld [vmem:[#allocation5 + $0xc] sm:$0xf]
    %v51 = vld [vmem:[#allocation5 + $0x10] sm:$0xf]
    %v52 = vld [vmem:[#allocation5 + $0x14] sm:$0xf]
    %v53 = vld [vmem:[#allocation5 + $0x18] sm:$0xf]
    %v54 = vld [vmem:[#allocation5 + $0x1c] sm:$0xf]
    %v55 = vld [vmem:[#allocation5 + $0x20] sm:$0xf]
    %v56 = vld [vmem:[#allocation5 + $0x24] sm:$0xf]
    %v57 = vld [vmem:[#allocation5 + $0x28] sm:$0xf]
    %v58 = vld [vmem:[#allocation5 + $0x2c] sm:$0xf]
    %v59 = vld [vmem:[#allocation5 + $0x30] sm:$0xf]
    %v60 = vld [vmem:[#allocation5 + $0x34] sm:$0xf]
    %v61 = vld [vmem:[#allocation5 + $0x38] sm:$0xf]
    %v62 = vld [vmem:[#allocation5 + $0x3c] sm:$0xf]
    %v63 = vld [vmem:[#allocation5 + $0x40] sm:$0xf]
    %v64 = vld [vmem:[#allocation5 + $0x44] sm:$0xf]
    %v65 = vld [vmem:[#allocation5 + $0x48] sm:$0xf]
    %v66 = vld [vmem:[#allocation5 + $0x4c] sm:$0xf]
    %v67 = vld [vmem:[#allocation5 + $0x50] sm:$0xf]
    %v68 = vld [vmem:[#allocation5 + $0x54] sm:$0xf]
    %v69 = vld [vmem:[#allocation5 + $0x58] sm:$0xf]
    %v70 = vld [vmem:[#allocation5 + $0x5c] sm:$0xf]
    %v71 = vld [vmem:[#allocation5 + $0x60] sm:$0xf]
    %v72 = vld [vmem:[#allocation5 + $0x64] sm:$0xf]
    %v73 = vld [vmem:[#allocation5 + $0x68] sm:$0xf]
    %v74 = vld [vmem:[#allocation5 + $0x6c] sm:$0xf]
    %v75 = vld [vmem:[#allocation5 + $0x70] sm:$0xf]
    %v76 = vld [vmem:[#allocation5 + $0x74] sm:$0xf]
    %v77 = vld [vmem:[#allocation5 + $0x78] sm:$0xf]
    %v78 = vld [vmem:[#allocation5 + $0x7c] sm:$0xf]
    %v79 = vld [vmem:[#allocation5 + $0x80] sm:$0xf]
    %v80 = vld [vmem:[#allocation5 + $0x84] sm:$0xf]
    %v81 = vld [vmem:[#allocation5 + $0x88] sm:$0xf]
    %v82 = vld [vmem:[#allocation5 + $0x8c] sm:$0xf]
    %v83 = vld [vmem:[#allocation5 + $0x90] sm:$0xf]
    %v84 = vld [vmem:[#allocation5 + $0x94] sm:$0xf]
    %v85 = vld [vmem:[#allocation5 + $0x98] sm:$0xf]
    %v86 = vld [vmem:[#allocation5 + $0x9c] sm:$0xf]
    %v87 = vld [vmem:[#allocation5 + $0xa0] sm:$0xf]
    %v88 = vld [vmem:[#allocation5 + $0xa4] sm:$0xf]
    %v89 = vld [vmem:[#allocation5 + $0xa8] sm:$0xf]
    %v90 = vld [vmem:[#allocation5 + $0xac] sm:$0xf]
    %v91 = vld [vmem:[#allocation5 + $0xb0] sm:$0xf]
    %v92 = vld [vmem:[#allocation5 + $0xb4] sm:$0xf]
    %v93 = vld [vmem:[#allocation5 + $0xb8] sm:$0xf]
    %v94 = vld [vmem:[#allocation5 + $0xbc] sm:$0xf]
    %v95 = vld [vmem:[#allocation5 + $0xc0] sm:$0x1]
    %v96 = vunpack.c.l.bf16 %v95
    %v97 = vld [vmem:[#allocation5 + $0xc0] sm:$0x2]
    %v98 = vunpack.c.l.bf16 %v97
    %v99 = vlaneseq
    %v100 = vshrl.u32 %v99, 7
    %v101 = vsub.s32 0, %v100
    %v102 = vrot.slane %v96, %v101
    %v119 = vunpack.c.l.b16 %v47
    %v120 = vunpack.c.l.b16 %v48
    %v121 = vunpack.c.l.b16 %v49
    %v122 = vunpack.c.l.b16 %v50
    %v123 = vunpack.c.l.b16 %v51
    %v124 = vunpack.c.l.b16 %v52
    %v125 = vunpack.c.l.b16 %v53
    %v126 = vunpack.c.l.b16 %v54
    %v127 = vunpack.c.l.b16 %v55
    %v128 = vunpack.c.l.b16 %v56
    %v129 = vunpack.c.l.b16 %v57
    %v130 = vunpack.c.l.b16 %v58
    %v131 = vunpack.c.l.b16 %v59
    %v132 = vunpack.c.l.b16 %v60
    %v133 = vunpack.c.l.b16 %v61
    %v134 = vunpack.c.l.b16 %v62
    %v135 = vpack.c.b16 %v120, %v119
    %v136 = vpack.c.b16 %v122, %v121
    %v137 = vpack.c.b16 %v124, %v123
    %v138 = vpack.c.b16 %v126, %v125
    %v139 = vpack.c.b16 %v128, %v127
    %v140 = vpack.c.b16 %v130, %v129
    %v141 = vpack.c.b16 %v132, %v131
    %v142 = vpack.c.b16 %v134, %v133
    %151 = vmatprep.subr.bf16.mxu0 0
    %152 = vmatpush1.bf16.msra.mxu0 %v135
    %153 = vmatprep.subr.bf16.mxu0 0
    %154 = vmatpush1.bf16.msra.mxu0 %v136
    %155 = vmatprep.subr.bf16.mxu0 0
    %156 = vmatpush1.bf16.msra.mxu0 %v137
    %157 = vmatprep.subr.bf16.mxu0 0
    %158 = vmatpush1.bf16.msra.mxu0 %v138
    %159 = vmatprep.subr.bf16.mxu0 0
    %160 = vmatpush1.bf16.msra.mxu0 %v139
    %161 = vmatprep.subr.bf16.mxu0 0
    %162 = vmatpush1.bf16.msra.mxu0 %v140
    %163 = vmatprep.subr.bf16.mxu0 0
    %164 = vmatpush1.bf16.msra.mxu0 %v141
    %165 = vmatprep.subr.bf16.mxu0 0
    %166 = vmatpush1.bf16.msra.mxu0 %v142
    %167 = vmatprep.subr.bf16.mxu0 0
    %168 = vmatpush1.bf16.msra.mxu0 0
    %169 = vmatprep.subr.bf16.mxu0 0
    %170 = vmatpush1.bf16.msra.mxu0 0
    %171 = vmatprep.subr.bf16.mxu0 0
    %172 = vmatpush1.bf16.msra.mxu0 0
    %173 = vmatprep.subr.bf16.mxu0 0
    %174 = vmatpush1.bf16.msra.mxu0 0
    %175 = vmatprep.subr.bf16.mxu0 0
    %176 = vmatpush1.bf16.msra.mxu0 0
    %177 = vmatprep.subr.bf16.mxu0 0
    %178 = vmatpush1.bf16.msra.mxu0 0
    %179 = vmatprep.subr.bf16.mxu0 0
    %180 = vmatpush1.bf16.msra.mxu0 0
    %181 = vmatprep.subr.bf16.mxu0 0
    %182 = vmatpush1.bf16.msra.mxu0 0
    %183 = vmatprep.mubr.bf16.mxu0 0
    %184 = vmatmul.mubr.bf16.gmra.mrb[0].mxu0 %v46
    %v185 = vpop.f32.mrb[0].mxu0
    %v186 = vadd.f32 %v102, %v185
    %v187 = vpop.f32.mrb[0].mxu0
    %v188 = vpop.f32.mrb[0].mxu0
    %v189 = vadd.f32 %v102, %v188
    %v190 = vpop.f32.mrb[0].mxu0
    %191 = vdwg.mxu0
    %v192 = vmax.f32 %v186, 0.0
    %v193 = vmax.f32 %v189, 0.0
    %v194 = vpack.c.bf16 %v193, %v192
    %v195 = vlaneseq
    %v196 = vshrl.u32 %v195, 7
    %v197 = vsub.s32 1, %v196
    %v198 = vrot.slane %v96, %v197
    %v215 = vunpack.c.l.b16 %v63
    %v216 = vunpack.c.l.b16 %v64
    %v217 = vunpack.c.l.b16 %v65
    %v218 = vunpack.c.l.b16 %v66
    %v219 = vunpack.c.l.b16 %v67
    %v220 = vunpack.c.l.b16 %v68
    %v221 = vunpack.c.l.b16 %v69
    %v222 = vunpack.c.l.b16 %v70
    %v223 = vunpack.c.l.b16 %v71
    %v224 = vunpack.c.l.b16 %v72
    %v225 = vunpack.c.l.b16 %v73
    %v226 = vunpack.c.l.b16 %v74
    %v227 = vunpack.c.l.b16 %v75
    %v228 = vunpack.c.l.b16 %v76
    %v229 = vunpack.c.l.b16 %v77
    %v230 = vunpack.c.l.b16 %v78
    %v231 = vpack.c.b16 %v216, %v215
    %v232 = vpack.c.b16 %v218, %v217
    %v233 = vpack.c.b16 %v220, %v219
    %v234 = vpack.c.b16 %v222, %v221
    %v235 = vpack.c.b16 %v224, %v223
    %v236 = vpack.c.b16 %v226, %v225
    %v237 = vpack.c.b16 %v228, %v227
    %v238 = vpack.c.b16 %v230, %v229
    %247 = vmatprep.subr.bf16.mxu0 0
    %248 = vmatpush1.bf16.msra.mxu0 %v231
    %249 = vmatprep.subr.bf16.mxu0 0
    %250 = vmatpush1.bf16.msra.mxu0 %v232
    %251 = vmatprep.subr.bf16.mxu0 0
    %252 = vmatpush1.bf16.msra.mxu0 %v233
    %253 = vmatprep.subr.bf16.mxu0 0
    %254 = vmatpush1.bf16.msra.mxu0 %v234
    %255 = vmatprep.subr.bf16.mxu0 0
    %256 = vmatpush1.bf16.msra.mxu0 %v235
    %257 = vmatprep.subr.bf16.mxu0 0
    %258 = vmatpush1.bf16.msra.mxu0 %v236
    %259 = vmatprep.subr.bf16.mxu0 0
    %260 = vmatpush1.bf16.msra.mxu0 %v237
    %261 = vmatprep.subr.bf16.mxu0 0
    %262 = vmatpush1.bf16.msra.mxu0 %v238
    %263 = vmatprep.subr.bf16.mxu0 0
    %264 = vmatpush1.bf16.msra.mxu0 0
    %265 = vmatprep.subr.bf16.mxu0 0
    %266 = vmatpush1.bf16.msra.mxu0 0
    %267 = vmatprep.subr.bf16.mxu0 0
    %268 = vmatpush1.bf16.msra.mxu0 0
    %269 = vmatprep.subr.bf16.mxu0 0
    %270 = vmatpush1.bf16.msra.mxu0 0
    %271 = vmatprep.subr.bf16.mxu0 0
    %272 = vmatpush1.bf16.msra.mxu0 0
    %273 = vmatprep.subr.bf16.mxu0 0
    %274 = vmatpush1.bf16.msra.mxu0 0
    %275 = vmatprep.subr.bf16.mxu0 0
    %276 = vmatpush1.bf16.msra.mxu0 0
    %277 = vmatprep.subr.bf16.mxu0 0
    %278 = vmatpush1.bf16.msra.mxu0 0
    %279 = vmatprep.mubr.bf16.mxu0 0
    %280 = vmatmul.mubr.bf16.gmra.mrb[0].mxu0 %v194
    %v281 = vpop.f32.mrb[0].mxu0
    %v282 = vadd.f32 %v198, %v281
    %v283 = vpop.f32.mrb[0].mxu0
    %v284 = vpop.f32.mrb[0].mxu0
    %v285 = vadd.f32 %v198, %v284
    %v286 = vpop.f32.mrb[0].mxu0
    %287 = vdwg.mxu0
    %v288 = vmax.f32 %v282, 0.0
    %v289 = vmax.f32 %v285, 0.0
    %v290 = vpack.c.bf16 %v289, %v288
    %v291 = vlaneseq
    %v292 = vshrl.u32 %v291, 7
    %v293 = vsub.s32 2, %v292
    %v294 = vrot.slane %v98, %v293
    %v311 = vunpack.c.l.b16 %v79
    %v312 = vunpack.c.l.b16 %v80
    %v313 = vunpack.c.l.b16 %v81
    %v314 = vunpack.c.l.b16 %v82
    %v315 = vunpack.c.l.b16 %v83
    %v316 = vunpack.c.l.b16 %v84
    %v317 = vunpack.c.l.b16 %v85
    %v318 = vunpack.c.l.b16 %v86
    %v319 = vunpack.c.l.b16 %v87
    %v320 = vunpack.c.l.b16 %v88
    %v321 = vunpack.c.l.b16 %v89
    %v322 = vunpack.c.l.b16 %v90
    %v323 = vunpack.c.l.b16 %v91
    %v324 = vunpack.c.l.b16 %v92
    %v325 = vunpack.c.l.b16 %v93
    %v326 = vunpack.c.l.b16 %v94
    %v327 = vpack.c.b16 %v312, %v311
    %v328 = vpack.c.b16 %v314, %v313
    %v329 = vpack.c.b16 %v316, %v315
    %v330 = vpack.c.b16 %v318, %v317
    %v331 = vpack.c.b16 %v320, %v319
    %v332 = vpack.c.b16 %v322, %v321
    %v333 = vpack.c.b16 %v324, %v323
    %v334 = vpack.c.b16 %v326, %v325
    %343 = vmatprep.subr.bf16.mxu0 0
    %344 = vmatpush1.bf16.msra.mxu0 %v327
    %345 = vmatprep.subr.bf16.mxu0 0
    %346 = vmatpush1.bf16.msra.mxu0 %v328
    %347 = vmatprep.subr.bf16.mxu0 0
    %348 = vmatpush1.bf16.msra.mxu0 %v329
    %349 = vmatprep.subr.bf16.mxu0 0
    %350 = vmatpush1.bf16.msra.mxu0 %v330
    %351 = vmatprep.subr.bf16.mxu0 0
    %352 = vmatpush1.bf16.msra.mxu0 %v331
    %353 = vmatprep.subr.bf16.mxu0 0
    %354 = vmatpush1.bf16.msra.mxu0 %v332
    %355 = vmatprep.subr.bf16.mxu0 0
    %356 = vmatpush1.bf16.msra.mxu0 %v333
    %357 = vmatprep.subr.bf16.mxu0 0
    %358 = vmatpush1.bf16.msra.mxu0 %v334
    %359 = vmatprep.subr.bf16.mxu0 0
    %360 = vmatpush1.bf16.msra.mxu0 0
    %361 = vmatprep.subr.bf16.mxu0 0
    %362 = vmatpush1.bf16.msra.mxu0 0
    %363 = vmatprep.subr.bf16.mxu0 0
    %364 = vmatpush1.bf16.msra.mxu0 0
    %365 = vmatprep.subr.bf16.mxu0 0
    %366 = vmatpush1.bf16.msra.mxu0 0
    %367 = vmatprep.subr.bf16.mxu0 0
    %368 = vmatpush1.bf16.msra.mxu0 0
    %369 = vmatprep.subr.bf16.mxu0 0
    %370 = vmatpush1.bf16.msra.mxu0 0
    %371 = vmatprep.subr.bf16.mxu0 0
    %372 = vmatpush1.bf16.msra.mxu0 0
    %373 = vmatprep.subr.bf16.mxu0 0
    %374 = vmatpush1.bf16.msra.mxu0 0
    %375 = vmatprep.mubr.bf16.mxu0 0
    %376 = vmatmul.mubr.bf16.gmra.mrb[0].mxu0 %v290
    %v377 = vpop.f32.mrb[0].mxu0
    %v378 = vadd.f32 %v294, %v377
    %v379 = vpop.f32.mrb[0].mxu0
    %v380 = vpop.f32.mrb[0].mxu0
    %v381 = vadd.f32 %v294, %v380
    %v382 = vpop.f32.mrb[0].mxu0
    %383 = vdwg.mxu0
    %vm384 = vcmask 64512
    %385 = vst.msk [vmem:[%s2] sm:$0xff] %vm384, %v378
    %386 = vst.msk [vmem:[%s2 + $0x8] sm:$0xff] %vm384, %v381
    // Predicated region
    $region18: #{tpu_custom_call.1} parent=1 // pred_check
      _
    $region19: #{tpu_custom_call.1} parent=1 // pred_check_branch
      %388 = sbr.rel (0) target = $region21
    $region20: #{tpu_custom_call.1} parent=1 // pred_region
      _
    $region21: #{tpu_custom_call.1} parent=1 // pred_fallthru
      _
    // Predicated region
    $region22: #{tpu_custom_call.1} parent=1 // pred_check
      _
    $region23: #{tpu_custom_call.1} parent=1 // pred_check_branch
      %390 = sbr.rel (0) target = $region25
    $region24: #{tpu_custom_call.1} parent=1 // pred_region
      _
    $region25: #{tpu_custom_call.1} parent=1 // pred_fallthru
      _
    %391 = vsyncpa [#allocation4], 1
    %392 = vsyncpa [#allocation6], 1

</llo_original>
